<compile_context>
chip_gen: v5e
topology: v5e:2x2
jax: 0.10.0
libtpu: 0.0.40
codegen_flags: <defaults>
</compile_context>

<pallas_src>
import jax
import jax.numpy as jnp
from jax.experimental import pallas as pl
from jax.experimental.pallas import tpu as pltpu


def _resnet_block_transpose1d_kernel(x_ref, w_ref, b_ref, out_ref, xp_sc):
    """One grid step == BB batch elements; the whole residual block in one pass.

    x_ref  : (BB, C, L)            channels-first input tile (compute dtype)
    w_ref  : (layers*K, C, C)      taps: w_ref[l*K+k][co, ci] = w_l[ci, co, K-1-k]
                                   (kernel-flipped + transposed so
                                    acc += w_ref[l*K+k] @ x_pad[:, k:k+L])
    b_ref  : (layers, C, 1) f32    per-layer bias (broadcast over L lanes)
    out_ref: (BB, C, L)            output tile
    xp_sc  : (BB, C, L+2P) VMEM    zero-padded activations, reused across layers
    """
    BB, C, L = out_ref.shape
    n_layers = b_ref.shape[0]
    K = w_ref.shape[0] // n_layers
    P = (xp_sc.shape[2] - L) // 2

    # Keep the P-column halos zero.  Re-done each step (two tiny masked stores)
    # so correctness does not depend on which TensorCore ran grid step 0.
    xp_sc[:, :, pl.ds(0, P)] = jnp.zeros((BB, C, P), xp_sc.dtype)
    xp_sc[:, :, pl.ds(P + L, P)] = jnp.zeros((BB, C, P), xp_sc.dtype)

    for bb in range(BB):                          # static unroll over batch elems
        cur = None
        for layer in range(n_layers):             # static unroll (layers is small)
            if layer == 0:
                xp_sc[bb, :, pl.ds(P, L)] = x_ref[bb]
            else:
                xp_sc[bb, :, pl.ds(P, L)] = cur.astype(xp_sc.dtype)
            # acc is initialised by the k=0 matmul: no zero-fill needed.
            acc = jnp.dot(w_ref[layer * K], xp_sc[bb, :, pl.ds(0, L)],
                          preferred_element_type=jnp.float32)
            for k in range(1, K):                 # static unroll over the K taps
                acc = acc + jnp.dot(w_ref[layer * K + k],
                                    xp_sc[bb, :, pl.ds(k, L)],
                                    preferred_element_type=jnp.float32)
            cur = jnp.maximum(acc + b_ref[layer], 0.0)     # bias + ReLU (f32, VPU)
        # Residual add: re-read x from the VMEM tile instead of keeping it live.
        out_ref[bb] = (cur + x_ref[bb].astype(jnp.float32)).astype(out_ref.dtype)


def _pick_batch_block(B, C, L, P, itemsize):
    """Largest per-step batch block that fits a conservative VMEM budget,
    divides B, and leaves >= 2 grid steps when B >= 2 (feeds both v7x TCs)."""
    per_b = 4 * C * L * itemsize + C * (L + 2 * P) * itemsize   # 2x-buffered x+out, scratch
    budget = 8 * 2 ** 20
    bb = max(1, min(B, budget // max(per_b, 1)))
    if B >= 2:
        bb = min(bb, B // 2)
    while B % bb:
        bb -= 1
    return bb


def resnet_block_transpose1d(x, weights, biases, *, kernel_size=5, compute_dtype=None):
    """Forward pass of ResNetBlockTranspose1d.

    x       : (B, C, L)  PyTorch channels-first layout (kept end to end).
    weights : list of (C_in, C_out, K) ConvTranspose1d weights (C_in == C_out == C,
              required by the residual add, as in the PyTorch module).
    biases  : list of (C_out,) biases.
    compute_dtype : dtype of resident weights/activations inside the kernel
              (pass jnp.bfloat16 to halve HBM/VMEM traffic); accumulation,
              bias, ReLU and the residual stay f32.
    Returns : (B, C, L) in x.dtype.
    """
    B, C, L = x.shape
    K = int(kernel_size)
    assert K % 2 == 1, "kernel_size must be odd for length-preserving ConvTranspose1d"
    P = K // 2
    n_layers = len(weights)
    assert n_layers >= 1 and len(biases) == n_layers
    for w in weights:
        assert w.shape == (C, C, K), "residual add requires C_in == C_out"

    compute_dtype = jnp.dtype(compute_dtype if compute_dtype is not None else x.dtype)
    out_dtype = x.dtype

    # ConvTranspose1d(stride=1, pad=P) == correlation of the P-padded input with
    # the flipped kernel:  out[co, l] = sum_k W_k[co, ci] * x_pad[ci, l + k]
    # with W_k[co, ci] = w[ci, co, K-1-k].  Stored as a 3-D slab so the kernel
    # takes aligned first-axis views.
    w_slab = jnp.stack(
        [jnp.transpose(jnp.flip(w, axis=-1), (2, 1, 0)) for w in weights]
    ).reshape(n_layers * K, C, C).astype(compute_dtype)                 # (layers*K, C, C)
    b_all = jnp.stack([jnp.reshape(b, (C, 1)) for b in biases]).astype(jnp.float32)

    x_in = x.astype(compute_dtype)

    BB = _pick_batch_block(B, C, L, P, compute_dtype.itemsize)
    grid = (B // BB,)

    # Explicit VMEM budget with headroom; capped at v7x's 64 MiB physical VMEM.
    itemsize = compute_dtype.itemsize
    vmem_needed = (2 * (n_layers * K * C * C * itemsize + n_layers * C * 4)
                   + 4 * BB * C * L * max(itemsize, jnp.dtype(out_dtype).itemsize)
                   + BB * C * (L + 2 * P) * itemsize)
    vmem_limit = int(min(max(2 * vmem_needed, 32 * 2 ** 20), 64 * 2 ** 20))

    out = pl.pallas_call(
        _resnet_block_transpose1d_kernel,
        out_shape=jax.ShapeDtypeStruct((B, C, L), out_dtype),
        grid_spec=pltpu.PrefetchScalarGridSpec(
            num_scalar_prefetch=0,
            grid=grid,
            in_specs=[
                pl.BlockSpec((BB, C, L), lambda i: (i, 0, 0)),              # x tile
                pl.BlockSpec((n_layers * K, C, C), lambda i: (0, 0, 0)),    # weights (resident)
                pl.BlockSpec((n_layers, C, 1), lambda i: (0, 0, 0)),        # biases (resident)
            ],
            out_specs=pl.BlockSpec((BB, C, L), lambda i: (i, 0, 0)),
            scratch_shapes=[pltpu.VMEM((BB, C, L + 2 * P), compute_dtype)],
        ),
        compiler_params=pltpu.CompilerParams(
            dimension_semantics=("parallel",),    # batch blocks are independent
            vmem_limit_bytes=vmem_limit,
        ),
    )(x_in, w_slab, b_all)

    return out


def _reference_block(x, weights, biases, *, kernel_size):
    """Direct transcription of PyTorch ConvTranspose1d(stride=1, padding=K//2)
    + ReLU, repeated `layers` times, plus the residual.  Written from the
    ConvTranspose definition (out[:, co, l] += y[:, ci, l + P - k] * w[ci, co, k])
    without the flip/correlation identity, so it checks the kernel's derivation."""
    K = kernel_size
    P = K // 2
    B, C, L = x.shape
    y = x.astype(jnp.float32)
    for w, b in zip(weights, biases):
        out = jnp.broadcast_to(b[None, :, None], (B, C, L)).astype(jnp.float32)
        yp = jnp.pad(y, ((0, 0), (0, 0), (P, P)))            # yp[..., j+P] = y[..., j]
        for k in range(K):
            out = out + jnp.einsum(
                "bcl,co->bol",
                yp[:, :, 2 * P - k: 2 * P - k + L],          # = y[..., l + P - k]
                w[:, :, k].astype(jnp.float32),
            )
        y = jnp.maximum(out, 0.0)
    return y + x.astype(jnp.float32)


if __name__ == "__main__":
    # Small shapes consistent with the module: batch=2, channels=4, length=16,
    # kernel_size=5, layers=2 (out_channels == in_channels for the residual add).
    batch, channels, length = 2, 4, 16
    kernel_size, n_layers = 5, 2

    key = jax.random.PRNGKey(0)
    keys = jax.random.split(key, 2 * n_layers + 1)
    x = jax.random.normal(keys[0], (batch, channels, length), jnp.float32)

    scale = 1.0 / jnp.sqrt(channels * kernel_size)
    weights, biases = [], []
    for i in range(n_layers):
        weights.append(
            jax.random.uniform(keys[1 + 2 * i], (channels, channels, kernel_size),
                               minval=-scale, maxval=scale, dtype=jnp.float32))
        biases.append(
            jax.random.uniform(keys[2 + 2 * i], (channels,),
                               minval=-scale, maxval=scale, dtype=jnp.float32))

    out = resnet_block_transpose1d(x, weights, biases, kernel_size=kernel_size)
    out = jax.block_until_ready(out)

    ref = _reference_block(x, weights, biases, kernel_size=kernel_size)
    ref = jax.block_until_ready(ref)

    assert out.shape == x.shape
    max_err = float(jnp.max(jnp.abs(out - ref)))
    assert jnp.allclose(out, ref, atol=1e-5, rtol=1e-5), max_err

    print("KERNEL_OK")
</pallas_src>

<mosaic_0001>
module attributes {stable_mosaic.version = 11 : i64} {
  func.func @_resnet_block_transpose1d_kernel(%arg0: i32, %arg1: memref<1x4x16xf32, #tpu.memory_space<vmem>>, %arg2: memref<10x4x4xf32, #tpu.memory_space<vmem>>, %arg3: memref<2x4x1xf32, #tpu.memory_space<vmem>>, %arg4: memref<1x4x16xf32, #tpu.memory_space<vmem>>, %arg5: memref<1x4x20xf32, #tpu.memory_space<vmem>>) attributes {dimension_semantics = [#tpu.dimension_semantics<parallel>], iteration_bounds = array<i64: 2>, scalar_prefetch = 0 : i64, scratch_operands = 1 : i64, tpu.core_type = #tpu.core_type<tc>, window_params = [{transform_indices = @transform_0, window_bounds = array<i64: 1, 4, 16>}, {pipeline_mode = #tpu.pipeline_mode<synchronous>, transform_indices = @transform_1, window_bounds = array<i64: 10, 4, 4>}, {pipeline_mode = #tpu.pipeline_mode<synchronous>, transform_indices = @transform_2, window_bounds = array<i64: 2, 4, 1>}, {transform_indices = @transform_3, window_bounds = array<i64: 1, 4, 16>}]} {
    %cst = arith.constant 0.000000e+00 : f32
    %0 = vector.broadcast %cst : f32 to vector<1x4x2xf32>
    %c0 = arith.constant 0 : index
    %c0_0 = arith.constant 0 : index
    %c0_1 = arith.constant 0 : index
    %1 = vector.load %arg5[%c0, %c0_0, %c0_1] : memref<1x4x20xf32, #tpu.memory_space<vmem>>, vector<1x4x2xf32>
    tpu.vector_store %arg5[%c0, %c0_0, %c0_1], %0 {strides = array<i32>} : memref<1x4x20xf32, #tpu.memory_space<vmem>>, vector<1x4x2xf32>,
    %cst_2 = arith.constant 0.000000e+00 : f32
    %2 = vector.broadcast %cst_2 : f32 to vector<1x4x2xf32>
    %c0_3 = arith.constant 0 : index
    %c0_4 = arith.constant 0 : index
    %c18 = arith.constant 18 : index
    %3 = vector.load %arg5[%c0_3, %c0_4, %c18] : memref<1x4x20xf32, #tpu.memory_space<vmem>>, vector<1x4x2xf32>
    tpu.vector_store %arg5[%c0_3, %c0_4, %c18], %2 {strides = array<i32>} : memref<1x4x20xf32, #tpu.memory_space<vmem>>, vector<1x4x2xf32>,
    %c0_5 = arith.constant 0 : index
    %c0_6 = arith.constant 0 : index
    %c0_7 = arith.constant 0 : index
    %4 = vector.load %arg1[%c0_5, %c0_6, %c0_7] : memref<1x4x16xf32, #tpu.memory_space<vmem>>, vector<1x4x16xf32>
    %5 = vector.shape_cast %4 : vector<1x4x16xf32> to vector<4x16xf32>
    %c0_8 = arith.constant 0 : index
    %c0_9 = arith.constant 0 : index
    %c2 = arith.constant 2 : index
    %6 = vector.load %arg5[%c0_8, %c0_9, %c2] : memref<1x4x20xf32, #tpu.memory_space<vmem>>, vector<1x4x16xf32>
    %7 = vector.shape_cast %6 : vector<1x4x16xf32> to vector<4x16xf32>
    %8 = vector.shape_cast %5 : vector<4x16xf32> to vector<1x4x16xf32>
    tpu.vector_store %arg5[%c0_8, %c0_9, %c2], %8 {strides = array<i32>} : memref<1x4x20xf32, #tpu.memory_space<vmem>>, vector<1x4x16xf32>,
    %c0_10 = arith.constant 0 : index
    %c0_11 = arith.constant 0 : index
    %c0_12 = arith.constant 0 : index
    %9 = vector.load %arg2[%c0_10, %c0_11, %c0_12] : memref<10x4x4xf32, #tpu.memory_space<vmem>>, vector<1x4x4xf32>
    %10 = vector.shape_cast %9 : vector<1x4x4xf32> to vector<4x4xf32>
    %c0_13 = arith.constant 0 : index
    %c0_14 = arith.constant 0 : index
    %c0_15 = arith.constant 0 : index
    %11 = vector.load %arg5[%c0_13, %c0_14, %c0_15] : memref<1x4x20xf32, #tpu.memory_space<vmem>>, vector<1x4x16xf32>
    %12 = vector.shape_cast %11 : vector<1x4x16xf32> to vector<4x16xf32>
    %cst_16 = arith.constant dense<0.000000e+00> : vector<4x16xf32>
    %13 = tpu.matmul %10, %12, %cst_16 {dimension_numbers = #tpu.dot_dimension_numbers<[1], [0], [0], [1], [0, 0, 1, 1], [], []>} : vector<4x4xf32>, vector<4x16xf32>, vector<4x16xf32> -> vector<4x16xf32>
    %c1 = arith.constant 1 : index
    %c0_17 = arith.constant 0 : index
    %c0_18 = arith.constant 0 : index
    %14 = vector.load %arg2[%c1, %c0_17, %c0_18] : memref<10x4x4xf32, #tpu.memory_space<vmem>>, vector<1x4x4xf32>
    %15 = vector.shape_cast %14 : vector<1x4x4xf32> to vector<4x4xf32>
    %c0_19 = arith.constant 0 : index
    %c0_20 = arith.constant 0 : index
    %c1_21 = arith.constant 1 : index
    %16 = vector.load %arg5[%c0_19, %c0_20, %c1_21] : memref<1x4x20xf32, #tpu.memory_space<vmem>>, vector<1x4x16xf32>
    %17 = vector.shape_cast %16 : vector<1x4x16xf32> to vector<4x16xf32>
    %cst_22 = arith.constant dense<0.000000e+00> : vector<4x16xf32>
    %18 = tpu.matmul %15, %17, %cst_22 {dimension_numbers = #tpu.dot_dimension_numbers<[1], [0], [0], [1], [0, 0, 1, 1], [], []>} : vector<4x4xf32>, vector<4x16xf32>, vector<4x16xf32> -> vector<4x16xf32>
    %19 = arith.addf %13, %18 : vector<4x16xf32>
    %c2_23 = arith.constant 2 : index
    %c0_24 = arith.constant 0 : index
    %c0_25 = arith.constant 0 : index
    %20 = vector.load %arg2[%c2_23, %c0_24, %c0_25] : memref<10x4x4xf32, #tpu.memory_space<vmem>>, vector<1x4x4xf32>
    %21 = vector.shape_cast %20 : vector<1x4x4xf32> to vector<4x4xf32>
    %c0_26 = arith.constant 0 : index
    %c0_27 = arith.constant 0 : index
    %c2_28 = arith.constant 2 : index
    %22 = vector.load %arg5[%c0_26, %c0_27, %c2_28] : memref<1x4x20xf32, #tpu.memory_space<vmem>>, vector<1x4x16xf32>
    %23 = vector.shape_cast %22 : vector<1x4x16xf32> to vector<4x16xf32>
    %cst_29 = arith.constant dense<0.000000e+00> : vector<4x16xf32>
    %24 = tpu.matmul %21, %23, %cst_29 {dimension_numbers = #tpu.dot_dimension_numbers<[1], [0], [0], [1], [0, 0, 1, 1], [], []>} : vector<4x4xf32>, vector<4x16xf32>, vector<4x16xf32> -> vector<4x16xf32>
    %25 = arith.addf %19, %24 : vector<4x16xf32>
    %c3 = arith.constant 3 : index
    %c0_30 = arith.constant 0 : index
    %c0_31 = arith.constant 0 : index
    %26 = vector.load %arg2[%c3, %c0_30, %c0_31] : memref<10x4x4xf32, #tpu.memory_space<vmem>>, vector<1x4x4xf32>
    %27 = vector.shape_cast %26 : vector<1x4x4xf32> to vector<4x4xf32>
    %c0_32 = arith.constant 0 : index
    %c0_33 = arith.constant 0 : index
    %c3_34 = arith.constant 3 : index
    %28 = vector.load %arg5[%c0_32, %c0_33, %c3_34] : memref<1x4x20xf32, #tpu.memory_space<vmem>>, vector<1x4x16xf32>
    %29 = vector.shape_cast %28 : vector<1x4x16xf32> to vector<4x16xf32>
    %cst_35 = arith.constant dense<0.000000e+00> : vector<4x16xf32>
    %30 = tpu.matmul %27, %29, %cst_35 {dimension_numbers = #tpu.dot_dimension_numbers<[1], [0], [0], [1], [0, 0, 1, 1], [], []>} : vector<4x4xf32>, vector<4x16xf32>, vector<4x16xf32> -> vector<4x16xf32>
    %31 = arith.addf %25, %30 : vector<4x16xf32>
    %c4 = arith.constant 4 : index
    %c0_36 = arith.constant 0 : index
    %c0_37 = arith.constant 0 : index
    %32 = vector.load %arg2[%c4, %c0_36, %c0_37] : memref<10x4x4xf32, #tpu.memory_space<vmem>>, vector<1x4x4xf32>
    %33 = vector.shape_cast %32 : vector<1x4x4xf32> to vector<4x4xf32>
    %c0_38 = arith.constant 0 : index
    %c0_39 = arith.constant 0 : index
    %c4_40 = arith.constant 4 : index
    %34 = vector.load %arg5[%c0_38, %c0_39, %c4_40] : memref<1x4x20xf32, #tpu.memory_space<vmem>>, vector<1x4x16xf32>
    %35 = vector.shape_cast %34 : vector<1x4x16xf32> to vector<4x16xf32>
    %cst_41 = arith.constant dense<0.000000e+00> : vector<4x16xf32>
    %36 = tpu.matmul %33, %35, %cst_41 {dimension_numbers = #tpu.dot_dimension_numbers<[1], [0], [0], [1], [0, 0, 1, 1], [], []>} : vector<4x4xf32>, vector<4x16xf32>, vector<4x16xf32> -> vector<4x16xf32>
    %37 = arith.addf %31, %36 : vector<4x16xf32>
    %c0_42 = arith.constant 0 : index
    %c0_43 = arith.constant 0 : index
    %c0_44 = arith.constant 0 : index
    %38 = vector.load %arg3[%c0_42, %c0_43, %c0_44] : memref<2x4x1xf32, #tpu.memory_space<vmem>>, vector<1x4x1xf32>
    %39 = vector.shape_cast %38 : vector<1x4x1xf32> to vector<4x1xf32>
    %40 = vector.broadcast %39 : vector<4x1xf32> to vector<4x16xf32>
    %41 = arith.addf %37, %40 : vector<4x16xf32>
    %cst_45 = arith.constant 0.000000e+00 : f32
    %42 = vector.broadcast %cst_45 : f32 to vector<4x16xf32>
    %43 = arith.maximumf %41, %42 : vector<4x16xf32>
    %c0_46 = arith.constant 0 : index
    %c0_47 = arith.constant 0 : index
    %c2_48 = arith.constant 2 : index
    %44 = vector.load %arg5[%c0_46, %c0_47, %c2_48] : memref<1x4x20xf32, #tpu.memory_space<vmem>>, vector<1x4x16xf32>
    %45 = vector.shape_cast %44 : vector<1x4x16xf32> to vector<4x16xf32>
    %46 = vector.shape_cast %43 : vector<4x16xf32> to vector<1x4x16xf32>
    tpu.vector_store %arg5[%c0_46, %c0_47, %c2_48], %46 {strides = array<i32>} : memref<1x4x20xf32, #tpu.memory_space<vmem>>, vector<1x4x16xf32>,
    %c5 = arith.constant 5 : index
    %c0_49 = arith.constant 0 : index
    %c0_50 = arith.constant 0 : index
    %47 = vector.load %arg2[%c5, %c0_49, %c0_50] : memref<10x4x4xf32, #tpu.memory_space<vmem>>, vector<1x4x4xf32>
    %48 = vector.shape_cast %47 : vector<1x4x4xf32> to vector<4x4xf32>
    %c0_51 = arith.constant 0 : index
    %c0_52 = arith.constant 0 : index
    %c0_53 = arith.constant 0 : index
    %49 = vector.load %arg5[%c0_51, %c0_52, %c0_53] : memref<1x4x20xf32, #tpu.memory_space<vmem>>, vector<1x4x16xf32>
    %50 = vector.shape_cast %49 : vector<1x4x16xf32> to vector<4x16xf32>
    %cst_54 = arith.constant dense<0.000000e+00> : vector<4x16xf32>
    %51 = tpu.matmul %48, %50, %cst_54 {dimension_numbers = #tpu.dot_dimension_numbers<[1], [0], [0], [1], [0, 0, 1, 1], [], []>} : vector<4x4xf32>, vector<4x16xf32>, vector<4x16xf32> -> vector<4x16xf32>
    %c6 = arith.constant 6 : index
    %c0_55 = arith.constant 0 : index
    %c0_56 = arith.constant 0 : index
    %52 = vector.load %arg2[%c6, %c0_55, %c0_56] : memref<10x4x4xf32, #tpu.memory_space<vmem>>, vector<1x4x4xf32>
    %53 = vector.shape_cast %52 : vector<1x4x4xf32> to vector<4x4xf32>
    %c0_57 = arith.constant 0 : index
    %c0_58 = arith.constant 0 : index
    %c1_59 = arith.constant 1 : index
    %54 = vector.load %arg5[%c0_57, %c0_58, %c1_59] : memref<1x4x20xf32, #tpu.memory_space<vmem>>, vector<1x4x16xf32>
    %55 = vector.shape_cast %54 : vector<1x4x16xf32> to vector<4x16xf32>
    %cst_60 = arith.constant dense<0.000000e+00> : vector<4x16xf32>
    %56 = tpu.matmul %53, %55, %cst_60 {dimension_numbers = #tpu.dot_dimension_numbers<[1], [0], [0], [1], [0, 0, 1, 1], [], []>} : vector<4x4xf32>, vector<4x16xf32>, vector<4x16xf32> -> vector<4x16xf32>
    %57 = arith.addf %51, %56 : vector<4x16xf32>
    %c7 = arith.constant 7 : index
    %c0_61 = arith.constant 0 : index
    %c0_62 = arith.constant 0 : index
    %58 = vector.load %arg2[%c7, %c0_61, %c0_62] : memref<10x4x4xf32, #tpu.memory_space<vmem>>, vector<1x4x4xf32>
    %59 = vector.shape_cast %58 : vector<1x4x4xf32> to vector<4x4xf32>
    %c0_63 = arith.constant 0 : index
    %c0_64 = arith.constant 0 : index
    %c2_65 = arith.constant 2 : index
    %60 = vector.load %arg5[%c0_63, %c0_64, %c2_65] : memref<1x4x20xf32, #tpu.memory_space<vmem>>, vector<1x4x16xf32>
    %61 = vector.shape_cast %60 : vector<1x4x16xf32> to vector<4x16xf32>
    %cst_66 = arith.constant dense<0.000000e+00> : vector<4x16xf32>
    %62 = tpu.matmul %59, %61, %cst_66 {dimension_numbers = #tpu.dot_dimension_numbers<[1], [0], [0], [1], [0, 0, 1, 1], [], []>} : vector<4x4xf32>, vector<4x16xf32>, vector<4x16xf32> -> vector<4x16xf32>
    %63 = arith.addf %57, %62 : vector<4x16xf32>
    %c8 = arith.constant 8 : index
    %c0_67 = arith.constant 0 : index
    %c0_68 = arith.constant 0 : index
    %64 = vector.load %arg2[%c8, %c0_67, %c0_68] : memref<10x4x4xf32, #tpu.memory_space<vmem>>, vector<1x4x4xf32>
    %65 = vector.shape_cast %64 : vector<1x4x4xf32> to vector<4x4xf32>
    %c0_69 = arith.constant 0 : index
    %c0_70 = arith.constant 0 : index
    %c3_71 = arith.constant 3 : index
    %66 = vector.load %arg5[%c0_69, %c0_70, %c3_71] : memref<1x4x20xf32, #tpu.memory_space<vmem>>, vector<1x4x16xf32>
    %67 = vector.shape_cast %66 : vector<1x4x16xf32> to vector<4x16xf32>
    %cst_72 = arith.constant dense<0.000000e+00> : vector<4x16xf32>
    %68 = tpu.matmul %65, %67, %cst_72 {dimension_numbers = #tpu.dot_dimension_numbers<[1], [0], [0], [1], [0, 0, 1, 1], [], []>} : vector<4x4xf32>, vector<4x16xf32>, vector<4x16xf32> -> vector<4x16xf32>
    %69 = arith.addf %63, %68 : vector<4x16xf32>
    %c9 = arith.constant 9 : index
    %c0_73 = arith.constant 0 : index
    %c0_74 = arith.constant 0 : index
    %70 = vector.load %arg2[%c9, %c0_73, %c0_74] : memref<10x4x4xf32, #tpu.memory_space<vmem>>, vector<1x4x4xf32>
    %71 = vector.shape_cast %70 : vector<1x4x4xf32> to vector<4x4xf32>
    %c0_75 = arith.constant 0 : index
    %c0_76 = arith.constant 0 : index
    %c4_77 = arith.constant 4 : index
    %72 = vector.load %arg5[%c0_75, %c0_76, %c4_77] : memref<1x4x20xf32, #tpu.memory_space<vmem>>, vector<1x4x16xf32>
    %73 = vector.shape_cast %72 : vector<1x4x16xf32> to vector<4x16xf32>
    %cst_78 = arith.constant dense<0.000000e+00> : vector<4x16xf32>
    %74 = tpu.matmul %71, %73, %cst_78 {dimension_numbers = #tpu.dot_dimension_numbers<[1], [0], [0], [1], [0, 0, 1, 1], [], []>} : vector<4x4xf32>, vector<4x16xf32>, vector<4x16xf32> -> vector<4x16xf32>
    %75 = arith.addf %69, %74 : vector<4x16xf32>
    %c1_79 = arith.constant 1 : index
    %c0_80 = arith.constant 0 : index
    %c0_81 = arith.constant 0 : index
    %76 = vector.load %arg3[%c1_79, %c0_80, %c0_81] : memref<2x4x1xf32, #tpu.memory_space<vmem>>, vector<1x4x1xf32>
    %77 = vector.shape_cast %76 : vector<1x4x1xf32> to vector<4x1xf32>
    %78 = vector.broadcast %77 : vector<4x1xf32> to vector<4x16xf32>
    %79 = arith.addf %75, %78 : vector<4x16xf32>
    %cst_82 = arith.constant 0.000000e+00 : f32
    %80 = vector.broadcast %cst_82 : f32 to vector<4x16xf32>
    %81 = arith.maximumf %79, %80 : vector<4x16xf32>
    %c0_83 = arith.constant 0 : index
    %c0_84 = arith.constant 0 : index
    %c0_85 = arith.constant 0 : index
    %82 = vector.load %arg1[%c0_83, %c0_84, %c0_85] : memref<1x4x16xf32, #tpu.memory_space<vmem>>, vector<1x4x16xf32>
    %83 = vector.shape_cast %82 : vector<1x4x16xf32> to vector<4x16xf32>
    %84 = arith.addf %81, %83 : vector<4x16xf32>
    %c0_86 = arith.constant 0 : index
    %c0_87 = arith.constant 0 : index
    %c0_88 = arith.constant 0 : index
    %85 = vector.load %arg4[%c0_86, %c0_87, %c0_88] : memref<1x4x16xf32, #tpu.memory_space<vmem>>, vector<1x4x16xf32>
    %86 = vector.shape_cast %85 : vector<1x4x16xf32> to vector<4x16xf32>
    %87 = vector.shape_cast %84 : vector<4x16xf32> to vector<1x4x16xf32>
    tpu.vector_store %arg4[%c0_86, %c0_87, %c0_88], %87 {strides = array<i32>} : memref<1x4x16xf32, #tpu.memory_space<vmem>>, vector<1x4x16xf32>,
    return
  }
  func.func @transform_0(%arg0: i32) -> (i32, i32, i32) {
    %c0_i32 = arith.constant 0 : i32
    %c0_i32_0 = arith.constant 0 : i32
    %c0_i32_1 = arith.constant 0 : i32
    return %arg0, %c0_i32, %c0_i32_0 : i32, i32, i32
  }
  func.func @transform_1(%arg0: i32) -> (i32, i32, i32) {
    %c0_i32 = arith.constant 0 : i32
    %c0_i32_0 = arith.constant 0 : i32
    %c0_i32_1 = arith.constant 0 : i32
    %c0_i32_2 = arith.constant 0 : i32
    return %c0_i32, %c0_i32_0, %c0_i32_1 : i32, i32, i32
  }
  func.func @transform_2(%arg0: i32) -> (i32, i32, i32) {
    %c0_i32 = arith.constant 0 : i32
    %c0_i32_0 = arith.constant 0 : i32
    %c0_i32_1 = arith.constant 0 : i32
    %c0_i32_2 = arith.constant 0 : i32
    return %c0_i32, %c0_i32_0, %c0_i32_1 : i32, i32, i32
  }
  func.func @transform_3(%arg0: i32) -> (i32, i32, i32) {
    %c0_i32 = arith.constant 0 : i32
    %c0_i32_0 = arith.constant 0 : i32
    %c0_i32_1 = arith.constant 0 : i32
    return %arg0, %c0_i32, %c0_i32_0 : i32, i32, i32
  }
}

</mosaic_0001>

<llo_original>
// kernel: tpu_custom_call.1
$region0: #{tpu_custom_call.1}
  #allocation0 [shape = 'u32[]', space=smem, size = 0x4, offset = 0x4, fixed_abs, tag = 'smem constant byte address 0x4 - core index']
  #allocation1 [shape = 'u32[72,128]{1,0:T(1,128)}', space=vmem, size = 0x9000, scoped, tag = 'internal scratch']
  #allocation2 [shape = 'f32[1,4,20]{2,1,0:T(4,128)}', space=vmem, size = 0x800, scoped, tag = 'scratch operand']
  %s0 = inlined_call_operand.vmem [shape: f32[2,4,16], index: 0, kind: input, shape index: {}]
  %s1 = inlined_call_operand.vmem [shape: f32[10,4,4], index: 1, kind: input, shape index: {}]
  %s2 = inlined_call_operand.vmem [shape: f32[2,4,1], index: 2, kind: input, shape index: {}]
  %s3 = inlined_call_operand.hbm [shape: f32[2,4,16], index: 3, kind: output, shape index: {}]
  %s4 = sld [smem:[#allocation0]]
  $region45: #{tpu_custom_call.1} parent=0
    _
  %s6 = ssub.s32 1, %s4
  %s7 = scalar_select 0, %s6, %s4
  $region1: #{tpu_custom_call.1} parent=0
    #allocation3 [shape = 'u8[4096]{0}', space=vmem, size = 0x1000, scoped, tag = 'output window, operand 0']
    #allocation4 [shape = 's32[2]{0}', space=sflag, size = 0x8, scoped, tag = 'scoped memory for tpu_custom_call.1']
    %8 = vsyncpa [#allocation4], 0
    %s9 = scalar_lea.sflag [#allocation4], 1
    %10 = vsyncpa %s9, 0
    loop: start=0, step=1, limit=4
    $region2: #{tpu_custom_call.1} parent=1 // loop_pre_header
      _
    $region3: #{tpu_custom_call.1} parent=1 // loop_header
      %s12 = sphi 0, %s16
      %p13 = scmp.ge.s32.totalorder %s12, 4
      %s22 = sphi 0, %s24
      %s25 = sphi 0, %s22
      %s26 = sphi 0, %s25
      %s42 = sphi 0, %s26
      %s46 = sphi 0, %s46
      %s48 = sphi 0, %s46
      %s49 = sphi 0, %s48
      %s63 = sphi 0, %s49
      %s67 = sphi 0, %s67
      %s69 = sphi 0, %s67
      %s70 = sphi 0, %s69
      %s84 = sphi 0, %s70
      %s90 = sphi 0, %s92
      %s93 = sphi 0, %s90
      %s94 = sphi 0, %s93
      %s110 = sphi 0, %s94
    $region4: #{tpu_custom_call.1} parent=1 // loop_header_branch
      %15 = sbr.rel (%p13) target = $region8
    $region5: #{tpu_custom_call.1} parent=1 // loop_body
      %s17 = ssub.s32 %s12, 1
      %s18 = ssub.s32 %s12, 2
      %s19 = sadd.s32 %s12, 1
      %s20 = ssub.s32 %s12, %s19
      %p21 = scmp.eq.s32.totalorder %s20, 0
      %s23 = sadd.s32 %s22, 1
      %s24 = scalar_select %p21, %s22, %s23
      %p27 = pneg %p21
      %p28 = scmp.eq.s32.totalorder %s12, 1
      %p29 = por %p27, %p28
      %p30 = scmp.ne.s32.totalorder %s22, %s25
      %p31 = scmp.eq.s32.totalorder %s12, 0
      %p32 = por %p30, %p31
      %p33 = scmp.ne.s32.totalorder %s22, %s25
      %p34 = scmp.eq.s32.totalorder %s17, 1
      %p35 = por %p33, %p34
      %p36 = scmp.ne.s32.totalorder %s25, %s26
      %p37 = scmp.eq.s32.totalorder %s17, 0
      %p38 = por %p36, %p37
      %p39 = scmp.ne.s32.totalorder %s25, %s26
      %p40 = scmp.eq.s32.totalorder %s18, 1
      %p41 = por %p39, %p40
      %p43 = scmp.ne.s32.totalorder %s26, %s42
      %p44 = scmp.eq.s32.totalorder %s18, 0
      %p45 = por %p43, %p44
      %s47 = sadd.s32 %s46, 1
      %p50 = scmp.eq.s32.totalorder %s12, 1
      %p51 = scmp.ne.s32.totalorder %s46, %s48
      %p52 = scmp.eq.s32.totalorder %s12, 0
      %p53 = por %p51, %p52
      %p54 = scmp.ne.s32.totalorder %s46, %s48
      %p55 = scmp.eq.s32.totalorder %s17, 1
      %p56 = por %p54, %p55
      %p57 = scmp.ne.s32.totalorder %s48, %s49
      %p58 = scmp.eq.s32.totalorder %s17, 0
      %p59 = por %p57, %p58
      %p60 = scmp.ne.s32.totalorder %s48, %s49
      %p61 = scmp.eq.s32.totalorder %s18, 1
      %p62 = por %p60, %p61
      %p64 = scmp.ne.s32.totalorder %s49, %s63
      %p65 = scmp.eq.s32.totalorder %s18, 0
      %p66 = por %p64, %p65
      %s68 = sadd.s32 %s67, 1
      %p71 = scmp.eq.s32.totalorder %s12, 1
      %p72 = scmp.ne.s32.totalorder %s67, %s69
      %p73 = scmp.eq.s32.totalorder %s12, 0
      %p74 = por %p72, %p73
      %p75 = scmp.ne.s32.totalorder %s67, %s69
      %p76 = scmp.eq.s32.totalorder %s17, 1
      %p77 = por %p75, %p76
      %p78 = scmp.ne.s32.totalorder %s69, %s70
      %p79 = scmp.eq.s32.totalorder %s17, 0
      %p80 = por %p78, %p79
      %p81 = scmp.ne.s32.totalorder %s69, %s70
      %p82 = scmp.eq.s32.totalorder %s18, 1
      %p83 = por %p81, %p82
      %p85 = scmp.ne.s32.totalorder %s70, %s84
      %p86 = scmp.eq.s32.totalorder %s18, 0
      %p87 = por %p85, %p86
      %s88 = ssub.s32 %s12, %s19
      %p89 = scmp.eq.s32.totalorder %s88, 0
      %s91 = sadd.s32 %s90, 1
      %s92 = scalar_select %p89, %s90, %s91
      %p95 = pneg %p89
      %p96 = scmp.eq.s32.totalorder %s12, 1
      %p97 = por %p95, %p96
      %p98 = scmp.ne.s32.totalorder %s90, %s93
      %p99 = scmp.eq.s32.totalorder %s12, 0
      %p100 = por %p98, %p99
      %p101 = scmp.ne.s32.totalorder %s90, %s93
      %p102 = scmp.eq.s32.totalorder %s17, 1
      %p103 = por %p101, %p102
      %p104 = scmp.ne.s32.totalorder %s93, %s94
      %p105 = scmp.eq.s32.totalorder %s17, 0
      %p106 = por %p104, %p105
      %p107 = scmp.ne.s32.totalorder %s93, %s94
      %p108 = scmp.eq.s32.totalorder %s18, 1
      %p109 = por %p107, %p108
      %p111 = scmp.ne.s32.totalorder %s94, %s110
      %p112 = scmp.eq.s32.totalorder %s18, 0
      %p113 = por %p111, %p112
      %p114 = scmp.le.s32.totalorder 1, %s12
      %p115 = scmp.lt.s32.totalorder %s12, 3
      %p116 = pnand %p114, %p115
      %p117 = pneg %p116
      // Predicated region
      $region9: #{tpu_custom_call.1} parent=5 // pred_check
        _
      $region10: #{tpu_custom_call.1} parent=5 // pred_check_branch
        %119 = sbr.rel (%p116) target = $region12
      $region11: #{tpu_custom_call.1} parent=5 // pred_region
        %s120 = ssub.s32 %s12, 1
        // Predicated region
        $region13: #{tpu_custom_call.1} parent=11 // pred_check
          %p121 = pneg %p59
        $region14: #{tpu_custom_call.1} parent=11 // pred_check_branch
          %123 = sbr.rel (%p121) target = $region16
        $region15: #{tpu_custom_call.1} parent=11 // pred_region
          _
        $region16: #{tpu_custom_call.1} parent=11 // pred_fallthru
          _
        // Predicated region
        $region17: #{tpu_custom_call.1} parent=11 // pred_check
          %p124 = pneg %p80
        $region18: #{tpu_custom_call.1} parent=11 // pred_check_branch
          %126 = sbr.rel (%p124) target = $region20
        $region19: #{tpu_custom_call.1} parent=11 // pred_region
          _
        $region20: #{tpu_custom_call.1} parent=11 // pred_fallthru
          _
      $region12: #{tpu_custom_call.1} parent=5 // pred_fallthru
        _
      %p127 = scmp.lt.s32.totalorder %s12, 2
      // Predicated region
      $region21: #{tpu_custom_call.1} parent=5 // pred_check
        %p128 = pneg %p127
      $region22: #{tpu_custom_call.1} parent=5 // pred_check_branch
        %130 = sbr.rel (%p128) target = $region24
      $region23: #{tpu_custom_call.1} parent=5 // pred_region
        // Predicated region
        $region25: #{tpu_custom_call.1} parent=23 // pred_check
          %p131 = pneg %p32
        $region26: #{tpu_custom_call.1} parent=23 // pred_check_branch
          %133 = sbr.rel (%p131) target = $region28
        $region27: #{tpu_custom_call.1} parent=23 // pred_region
          %p134 = scmp.lt.s32.totalorder %s12, 1
          %s135 = scalar_select %p134, %s12, 1
          %s136 = smul.addr %s135, 4
          %s137 = scalar_lea.vmem %s0, %s136
        $region28: #{tpu_custom_call.1} parent=23 // pred_fallthru
          _
      $region24: #{tpu_custom_call.1} parent=5 // pred_fallthru
        _
      %p138 = scmp.le.s32.totalorder 1, %s12
      %p139 = scmp.lt.s32.totalorder %s12, 3
      %p140 = pnand %p138, %p139
      %p141 = pneg %p140
      // Predicated region
      $region29: #{tpu_custom_call.1} parent=5 // pred_check
        _
      $region30: #{tpu_custom_call.1} parent=5 // pred_check_branch
        %143 = sbr.rel (%p140) target = $region32
      $region31: #{tpu_custom_call.1} parent=5 // pred_region
        %s144 = ssub.s32 %s12, 1
        %p145 = scmp.lt.s32.totalorder %s17, 1
        %s146 = scalar_select %p145, %s17, 1
        %s147 = smul.addr %s146, 4
        %s148 = scalar_lea.vmem %s0, %s147
        %p149 = pneg %p38
        %p150 = pneg %p35
        %p151 = pneg %p59
        %p152 = pneg %p56
        %p153 = pneg %p80
        %p154 = pneg %p77
        %p155 = pneg %p106
        %p156 = pneg %p103
        %s157 = sand.u32 %s93, 1
        %s158 = scalar_lea.sflag [#allocation4], %s157
        %s159 = sand.u32 %s93, 1
        %s160 = smul.addr %s159, 4
        %s161 = scalar_lea.vmem [#allocation3], %s160
        %p162 = scmp.lt.s32.totalorder %s17, 1
        %s163 = scalar_select %p162, %s17, 1
        %s164 = smul.addr %s163, 4
        %s165 = scalar_lea.vmem %s0, %s164
        %vm166 = vcmask 11264
        %167 = vst.msk [vmem:[#allocation2] sm:$0xf] %vm166, 0.0
        %vm168 = vcmask 158864
        %169 = vst.msk [vmem:[#allocation2] sm:$0xf] %vm168, 0.0
        %v170 = vld [vmem:[%s165] sm:$0xf]
        %172 = vrot.lane.b32.xlu0 %v170, 2
        %v173 = vpop.permute.xlu0 %172
        %vm175 = vcmask 142352
        %176 = vst.msk [vmem:[#allocation2] sm:$0xf] %vm175, %v173
        %v177 = vld [vmem:[%s1] sm:$0xf]
        %v178 = vld [vmem:[#allocation2] sm:$0xf]
        %s179 = scalar_lea.vmem %s1, 4
        %v180 = vld [vmem:[%s179] sm:$0xf]
        %182 = vrot.lane.b32.xlu0 %v178, 127
        %v183 = vpop.permute.xlu0 %182
        %vm184 = vcmask 31744
        %v186 = vsel %vm184, %v180, 0
        %vm188 = vcmask 1043456
        %v189 = vsel %vm188, %v183, 0
        %191 = vmatpush.msra.mxu0 0.0
        %192 = vmatpush.msra.mxu0 0.0
        %193 = vmatpush.msra.mxu0 0.0
        %194 = vmatpush.msra.mxu0 0.0
        %195 = vmatpush.msra.mxu0 0.0
        %196 = vmatpush.msra.mxu0 0.0
        %197 = vmatpush.msra.mxu0 0.0
        %198 = vmatpush.msra.mxu0 0.0
        %199 = vmatpush.msra.mxu0 0.0
        %200 = vmatpush.msra.mxu0 0.0
        %201 = vmatpush.msra.mxu0 0.0
        %202 = vmatpush.msra.mxu0 0.0
        %203 = vmatpush.msra.mxu0 0.0
        %204 = vmatpush.msra.mxu0 0.0
        %205 = vmatpush.msra.mxu0 0.0
        %206 = vmatpush.msra.mxu0 %v189
        %207 = vmatmul.f32.gmra.mxu0 %v186
        %v208 = vpop.f32.mrf.mxu0
        %v209 = vadd.f32 0.0, %v208
        %210 = vdwg.mxu0
        %v212 = vsel %vm184, %v177, 0
        %v214 = vsel %vm188, %v178, 0
        %216 = vmatpush.msra.mxu0 0.0
        %217 = vmatpush.msra.mxu0 0.0
        %218 = vmatpush.msra.mxu0 0.0
        %219 = vmatpush.msra.mxu0 0.0
        %220 = vmatpush.msra.mxu0 0.0
        %221 = vmatpush.msra.mxu0 0.0
        %222 = vmatpush.msra.mxu0 0.0
        %223 = vmatpush.msra.mxu0 0.0
        %224 = vmatpush.msra.mxu0 0.0
        %225 = vmatpush.msra.mxu0 0.0
        %226 = vmatpush.msra.mxu0 0.0
        %227 = vmatpush.msra.mxu0 0.0
        %228 = vmatpush.msra.mxu0 0.0
        %229 = vmatpush.msra.mxu0 0.0
        %230 = vmatpush.msra.mxu0 0.0
        %231 = vmatpush.msra.mxu0 %v214
        %232 = vmatmul.f32.gmra.mxu0 %v212
        %v233 = vpop.f32.mrf.mxu0
        %v234 = vadd.f32 %v209, %v233
        %235 = vdwg.mxu0
        %s236 = scalar_lea.vmem %s1, 8
        %v237 = vld [vmem:[%s236] sm:$0xf]
        %238 = vrot.lane.b32.xlu0 %v178, 126
        %v239 = vpop.permute.xlu0 %238
        %v241 = vsel %vm184, %v237, 0
        %v243 = vsel %vm188, %v239, 0
        %245 = vmatpush.msra.mxu0 0.0
        %246 = vmatpush.msra.mxu0 0.0
        %247 = vmatpush.msra.mxu0 0.0
        %248 = vmatpush.msra.mxu0 0.0
        %249 = vmatpush.msra.mxu0 0.0
        %250 = vmatpush.msra.mxu0 0.0
        %251 = vmatpush.msra.mxu0 0.0
        %252 = vmatpush.msra.mxu0 0.0
        %253 = vmatpush.msra.mxu0 0.0
        %254 = vmatpush.msra.mxu0 0.0
        %255 = vmatpush.msra.mxu0 0.0
        %256 = vmatpush.msra.mxu0 0.0
        %257 = vmatpush.msra.mxu0 0.0
        %258 = vmatpush.msra.mxu0 0.0
        %259 = vmatpush.msra.mxu0 0.0
        %260 = vmatpush.msra.mxu0 %v243
        %261 = vmatmul.f32.gmra.mxu0 %v241
        %v262 = vpop.f32.mrf.mxu0
        %v263 = vadd.f32 0.0, %v262
        %264 = vdwg.mxu0
        %v265 = vadd.f32 %v234, %v263
        %s266 = scalar_lea.vmem %s1, 12
        %v267 = vld [vmem:[%s266] sm:$0xf]
        %268 = vrot.lane.b32.xlu0 %v178, 125
        %v269 = vpop.permute.xlu0 %268
        %v271 = vsel %vm184, %v267, 0
        %v273 = vsel %vm188, %v269, 0
        %275 = vmatpush.msra.mxu0 0.0
        %276 = vmatpush.msra.mxu0 0.0
        %277 = vmatpush.msra.mxu0 0.0
        %278 = vmatpush.msra.mxu0 0.0
        %279 = vmatpush.msra.mxu0 0.0
        %280 = vmatpush.msra.mxu0 0.0
        %281 = vmatpush.msra.mxu0 0.0
        %282 = vmatpush.msra.mxu0 0.0
        %283 = vmatpush.msra.mxu0 0.0
        %284 = vmatpush.msra.mxu0 0.0
        %285 = vmatpush.msra.mxu0 0.0
        %286 = vmatpush.msra.mxu0 0.0
        %287 = vmatpush.msra.mxu0 0.0
        %288 = vmatpush.msra.mxu0 0.0
        %289 = vmatpush.msra.mxu0 0.0
        %290 = vmatpush.msra.mxu0 %v273
        %291 = vmatmul.f32.gmra.mxu0 %v271
        %v292 = vpop.f32.mrf.mxu0
        %v293 = vadd.f32 0.0, %v292
        %294 = vdwg.mxu0
        %v295 = vadd.f32 %v265, %v293
        %s296 = scalar_lea.vmem %s1, 16
        %v297 = vld [vmem:[%s296] sm:$0xf]
        %298 = vrot.lane.b32.xlu0 %v178, 124
        %v299 = vpop.permute.xlu0 %298
        %v301 = vsel %vm184, %v297, 0
        %v303 = vsel %vm188, %v299, 0
        %305 = vmatpush.msra.mxu0 0.0
        %306 = vmatpush.msra.mxu0 0.0
        %307 = vmatpush.msra.mxu0 0.0
        %308 = vmatpush.msra.mxu0 0.0
        %309 = vmatpush.msra.mxu0 0.0
        %310 = vmatpush.msra.mxu0 0.0
        %311 = vmatpush.msra.mxu0 0.0
        %312 = vmatpush.msra.mxu0 0.0
        %313 = vmatpush.msra.mxu0 0.0
        %314 = vmatpush.msra.mxu0 0.0
        %315 = vmatpush.msra.mxu0 0.0
        %316 = vmatpush.msra.mxu0 0.0
        %317 = vmatpush.msra.mxu0 0.0
        %318 = vmatpush.msra.mxu0 0.0
        %319 = vmatpush.msra.mxu0 0.0
        %320 = vmatpush.msra.mxu0 %v303
        %321 = vmatmul.f32.gmra.mxu0 %v301
        %v322 = vpop.f32.mrf.mxu0
        %v323 = vadd.f32 0.0, %v322
        %324 = vdwg.mxu0
        %v325 = vadd.f32 %v295, %v323
        %v326 = vld [vmem:[%s2] sm:$0xf]
        %328 = vset.pattern.permute.xlu0 0
        %329 = vperm.xlu0 %328, %v326
        %v330 = vpop.permute.xlu0 %329
        %v332 = vadd.f32 %v325, %v330
        %v333 = vmax.f32 %v332, 0.0
        %335 = vrot.lane.b32.xlu0 %v333, 2
        %v336 = vpop.permute.xlu0 %335
        %338 = vst.msk [vmem:[#allocation2] sm:$0xf] %vm175, %v336
        %s339 = scalar_lea.vmem %s1, 20
        %v340 = vld [vmem:[%s339] sm:$0xf]
        %v341 = vld [vmem:[#allocation2] sm:$0xf]
        %s342 = scalar_lea.vmem %s1, 24
        %v343 = vld [vmem:[%s342] sm:$0xf]
        %345 = vrot.lane.b32.xlu0 %v341, 127
        %v346 = vpop.permute.xlu0 %345
        %v348 = vsel %vm184, %v343, 0
        %v350 = vsel %vm188, %v346, 0
        %352 = vmatpush.msra.mxu0 0.0
        %353 = vmatpush.msra.mxu0 0.0
        %354 = vmatpush.msra.mxu0 0.0
        %355 = vmatpush.msra.mxu0 0.0
        %356 = vmatpush.msra.mxu0 0.0
        %357 = vmatpush.msra.mxu0 0.0
        %358 = vmatpush.msra.mxu0 0.0
        %359 = vmatpush.msra.mxu0 0.0
        %360 = vmatpush.msra.mxu0 0.0
        %361 = vmatpush.msra.mxu0 0.0
        %362 = vmatpush.msra.mxu0 0.0
        %363 = vmatpush.msra.mxu0 0.0
        %364 = vmatpush.msra.mxu0 0.0
        %365 = vmatpush.msra.mxu0 0.0
        %366 = vmatpush.msra.mxu0 0.0
        %367 = vmatpush.msra.mxu0 %v350
        %368 = vmatmul.f32.gmra.mxu0 %v348
        %v369 = vpop.f32.mrf.mxu0
        %v370 = vadd.f32 0.0, %v369
        %371 = vdwg.mxu0
        %v373 = vsel %vm184, %v340, 0
        %v375 = vsel %vm188, %v341, 0
        %377 = vmatpush.msra.mxu0 0.0
        %378 = vmatpush.msra.mxu0 0.0
        %379 = vmatpush.msra.mxu0 0.0
        %380 = vmatpush.msra.mxu0 0.0
        %381 = vmatpush.msra.mxu0 0.0
        %382 = vmatpush.msra.mxu0 0.0
        %383 = vmatpush.msra.mxu0 0.0
        %384 = vmatpush.msra.mxu0 0.0
        %385 = vmatpush.msra.mxu0 0.0
        %386 = vmatpush.msra.mxu0 0.0
        %387 = vmatpush.msra.mxu0 0.0
        %388 = vmatpush.msra.mxu0 0.0
        %389 = vmatpush.msra.mxu0 0.0
        %390 = vmatpush.msra.mxu0 0.0
        %391 = vmatpush.msra.mxu0 0.0
        %392 = vmatpush.msra.mxu0 %v375
        %393 = vmatmul.f32.gmra.mxu0 %v373
        %v394 = vpop.f32.mrf.mxu0
        %v395 = vadd.f32 %v370, %v394
        %396 = vdwg.mxu0
        %s397 = scalar_lea.vmem %s1, 28
        %v398 = vld [vmem:[%s397] sm:$0xf]
        %399 = vrot.lane.b32.xlu0 %v341, 126
        %v400 = vpop.permute.xlu0 %399
        %v402 = vsel %vm184, %v398, 0
        %v404 = vsel %vm188, %v400, 0
        %406 = vmatpush.msra.mxu0 0.0
        %407 = vmatpush.msra.mxu0 0.0
        %408 = vmatpush.msra.mxu0 0.0
        %409 = vmatpush.msra.mxu0 0.0
        %410 = vmatpush.msra.mxu0 0.0
        %411 = vmatpush.msra.mxu0 0.0
        %412 = vmatpush.msra.mxu0 0.0
        %413 = vmatpush.msra.mxu0 0.0
        %414 = vmatpush.msra.mxu0 0.0
        %415 = vmatpush.msra.mxu0 0.0
        %416 = vmatpush.msra.mxu0 0.0
        %417 = vmatpush.msra.mxu0 0.0
        %418 = vmatpush.msra.mxu0 0.0
        %419 = vmatpush.msra.mxu0 0.0
        %420 = vmatpush.msra.mxu0 0.0
        %421 = vmatpush.msra.mxu0 %v404
        %422 = vmatmul.f32.gmra.mxu0 %v402
        %v423 = vpop.f32.mrf.mxu0
        %v424 = vadd.f32 0.0, %v423
        %425 = vdwg.mxu0
        %v426 = vadd.f32 %v395, %v424
        %s427 = scalar_lea.vmem %s1, 32
        %v428 = vld [vmem:[%s427] sm:$0xf]
        %429 = vrot.lane.b32.xlu0 %v341, 125
        %v430 = vpop.permute.xlu0 %429
        %v432 = vsel %vm184, %v428, 0
        %v434 = vsel %vm188, %v430, 0
        %436 = vmatpush.msra.mxu0 0.0
        %437 = vmatpush.msra.mxu0 0.0
        %438 = vmatpush.msra.mxu0 0.0
        %439 = vmatpush.msra.mxu0 0.0
        %440 = vmatpush.msra.mxu0 0.0
        %441 = vmatpush.msra.mxu0 0.0
        %442 = vmatpush.msra.mxu0 0.0
        %443 = vmatpush.msra.mxu0 0.0
        %444 = vmatpush.msra.mxu0 0.0
        %445 = vmatpush.msra.mxu0 0.0
        %446 = vmatpush.msra.mxu0 0.0
        %447 = vmatpush.msra.mxu0 0.0
        %448 = vmatpush.msra.mxu0 0.0
        %449 = vmatpush.msra.mxu0 0.0
        %450 = vmatpush.msra.mxu0 0.0
        %451 = vmatpush.msra.mxu0 %v434
        %452 = vmatmul.f32.gmra.mxu0 %v432
        %v453 = vpop.f32.mrf.mxu0
        %v454 = vadd.f32 0.0, %v453
        %455 = vdwg.mxu0
        %v456 = vadd.f32 %v426, %v454
        %s457 = scalar_lea.vmem %s1, 36
        %v458 = vld [vmem:[%s457] sm:$0xf]
        %459 = vrot.lane.b32.xlu0 %v341, 124
        %v460 = vpop.permute.xlu0 %459
        %v462 = vsel %vm184, %v458, 0
        %v464 = vsel %vm188, %v460, 0
        %466 = vmatpush.msra.mxu0 0.0
        %467 = vmatpush.msra.mxu0 0.0
        %468 = vmatpush.msra.mxu0 0.0
        %469 = vmatpush.msra.mxu0 0.0
        %470 = vmatpush.msra.mxu0 0.0
        %471 = vmatpush.msra.mxu0 0.0
        %472 = vmatpush.msra.mxu0 0.0
        %473 = vmatpush.msra.mxu0 0.0
        %474 = vmatpush.msra.mxu0 0.0
        %475 = vmatpush.msra.mxu0 0.0
        %476 = vmatpush.msra.mxu0 0.0
        %477 = vmatpush.msra.mxu0 0.0
        %478 = vmatpush.msra.mxu0 0.0
        %479 = vmatpush.msra.mxu0 0.0
        %480 = vmatpush.msra.mxu0 0.0
        %481 = vmatpush.msra.mxu0 %v464
        %482 = vmatmul.f32.gmra.mxu0 %v462
        %v483 = vpop.f32.mrf.mxu0
        %v484 = vadd.f32 0.0, %v483
        %485 = vdwg.mxu0
        %v486 = vadd.f32 %v456, %v484
        %s487 = scalar_lea.vmem %s2, 4
        %v488 = vld [vmem:[%s487] sm:$0xf]
        %490 = vset.pattern.permute.xlu0 0
        %491 = vperm.xlu0 %490, %v488
        %v492 = vpop.permute.xlu0 %491
        %v494 = vadd.f32 %v486, %v492
        %v495 = vmax.f32 %v494, 0.0
        %v496 = vld [vmem:[%s165] sm:$0xf]
        %v497 = vadd.f32 %v495, %v496
        %vm498 = vcmask 125952
        %499 = vst.msk [vmem:[%s161] sm:$0xf] %vm498, %v497
        %s500 = sand.u32 %s93, 1
        %s501 = scalar_lea.sflag [#allocation4], %s500
        %s502 = sand.u32 %s93, 1
        %s503 = smul.addr %s502, 4
        %s504 = scalar_lea.vmem [#allocation3], %s503
        // Predicated region
        $region33: #{tpu_custom_call.1} parent=31 // pred_check
          %p505 = pneg %p103
        $region34: #{tpu_custom_call.1} parent=31 // pred_check_branch
          %507 = sbr.rel (%p505) target = $region36
        $region35: #{tpu_custom_call.1} parent=31 // pred_region
          %509 = vsyncadd %s501, 0
          %s510 = smul.addr %s17, 4
          %s511 = scalar_lea.hbm %s3, %s510
          %s513 = sshll.u32 %s504, 4
          %s514 = int_to_ptr.vmem [resolvable:$true] %s513
          %s515 = sshll.u32 %s511, 4
          %s516 = int_to_ptr.hbm [resolvable:$true] %s515
          %518 = dma.vmem_to_hbm [thread:$0]  %s514, 64, %s516, %s501
        $region36: #{tpu_custom_call.1} parent=31 // pred_fallthru
          _
      $region32: #{tpu_custom_call.1} parent=5 // pred_fallthru
        _
      %p519 = scmp.le.s32.totalorder 2, %s12
      // Predicated region
      $region37: #{tpu_custom_call.1} parent=5 // pred_check
        %p520 = pneg %p519
      $region38: #{tpu_custom_call.1} parent=5 // pred_check_branch
        %522 = sbr.rel (%p520) target = $region40
      $region39: #{tpu_custom_call.1} parent=5 // pred_region
        %s523 = ssub.s32 %s12, 2
        // Predicated region
        $region41: #{tpu_custom_call.1} parent=39 // pred_check
          %p524 = pneg %p109
        $region42: #{tpu_custom_call.1} parent=39 // pred_check_branch
          %526 = sbr.rel (%p524) target = $region44
        $region43: #{tpu_custom_call.1} parent=39 // pred_region
          %s527 = sand.u32 %s94, 1
          %s528 = scalar_lea.sflag [#allocation4], %s527
          %s529 = sand.u32 %s94, 1
          %s530 = smul.addr %s529, 4
          %s531 = scalar_lea.vmem [#allocation3], %s530
          %533 = dma.done %s528, 64
        $region44: #{tpu_custom_call.1} parent=39 // pred_fallthru
          _
      $region40: #{tpu_custom_call.1} parent=5 // pred_fallthru
        _
    $region6: #{tpu_custom_call.1} parent=1 // loop_footer
      %s16 = sadd.s32 1, %s12
    $region7: #{tpu_custom_call.1} parent=1 // loop_footer_branch
      %11 = sbr.rel target = $region3
    $region8: #{tpu_custom_call.1} parent=1 // loop_exit
      _
    %534 = vsyncpa [#allocation4], 1
    %s535 = scalar_lea.sflag [#allocation4], 1
    %536 = vsyncpa %s535, 1

</llo_original>
